<compile_context>
chip_gen: v5e
topology: v5e:2x2
jax: 0.10.0
libtpu: 0.0.40
codegen_flags: <defaults>
</compile_context>

<pallas_src>
import jax
import jax.numpy as jnp
import numpy as np
from jax.experimental import pallas as pl
from jax.experimental.pallas import tpu as pltpu

# ---------------- configuration (small synthetic sizes) ----------------
B = 2                    # batch
CAM = 3                  # camera_num
FR = 8                   # fr_num (multiple of 8 -> sublane-aligned camera slabs)
C, H, W = 3, 16, 16      # frame_shape (stands in for (3, 224, 224))
CNN_FDIM = 128           # cnn_fdim (== v_hdim) -> lane-dense feature tiles
MLP_DIMS = (128, 64)     # mlp_dim (module default)
OUT_DIM = 2              # out_dim (final .view(..., 2) requires out_dim == 2)
OUT_PAD = 128            # lane-dense padded output width
LEAKY = 0.01             # default negative slope of nn.LeakyReLU
DT = jnp.float32
MXU_DT = jnp.bfloat16    # matmul-operand dtype (bf16-native MXU on v6e/v7x)

B_TILE = 1               # batch elements per grid step (keeps >= 2 steps at B=2)
ROWS_PER_B = CAM * FR    # rows per batch element (24, multiple of 8)
CHW = C * H * W


def _leaky(x):
    return jnp.where(x > 0, x, LEAKY * x)


# ------------------------------ fused kernel --------------------------------
def _fused_kernel(x_ref, wc_ref, bc_ref, w1l_ref, w1g_ref, b1_ref,
                  w2_ref, b2_ref, w3_ref, b3_ref, out_ref):
    # x_ref: (B_TILE*CAM*FR, CHW) f32 frames; cast to bf16 on the VMEM tile.
    x = x_ref[...].astype(MXU_DT)

    # Backbone stand-in: spatial mean folded into wc -> one MXU matmul, K=CHW.
    feats = (jnp.dot(x, wc_ref[...], preferred_element_type=jnp.float32)
             + bc_ref[...])                                     # (M, F) f32

    # Local contribution to layer 1 for all rows in the block (K = F).
    h_loc = jnp.dot(feats.astype(MXU_DT), w1l_ref[...],
                    preferred_element_type=jnp.float32)         # (M, h1)

    # Per-batch-element camera max -> glob contribution on FR rows only,
    # then tiled back to CAM*FR rows (FR % 8 == 0 -> aligned sublane copy).
    glob_parts = []
    for b in range(B_TILE):
        base = b * ROWS_PER_B
        g = feats[base:base + FR, :]
        for c in range(1, CAM):
            g = jnp.maximum(g, feats[base + c * FR:base + (c + 1) * FR, :])
        gh = jnp.dot(g.astype(MXU_DT), w1g_ref[...],
                     preferred_element_type=jnp.float32)        # (FR, h1)
        glob_parts.append(jnp.tile(gh, (CAM, 1)))               # (CAM*FR, h1)
    glob_h = glob_parts[0] if B_TILE == 1 else jnp.concatenate(glob_parts, 0)

    h = _leaky(h_loc + glob_h + b1_ref[...])
    h = _leaky(jnp.dot(h.astype(MXU_DT), w2_ref[...],
                       preferred_element_type=jnp.float32) + b2_ref[...])
    logits = (jnp.dot(h.astype(MXU_DT), w3_ref[...],
                      preferred_element_type=jnp.float32) + b3_ref[...])
    out_ref[...] = logits.astype(out_ref.dtype)                 # (M, OUT_PAD)


# --------------------- one-time parameter preparation -----------------------
def prepare_params(params, frame_shape):
    """Hoisted off the hot path: fold mean-pool into wc, split W1, pad W3."""
    _, h_, w_ = frame_shape
    hw = h_ * w_
    h1, h2 = MLP_DIMS
    wc_exp = (jnp.repeat(params["wc"], hw, axis=0) / hw).astype(MXU_DT)
    w1 = params["w1"]
    w3p = (jnp.zeros((h2, OUT_PAD), DT).at[:, :OUT_DIM]
           .set(params["w3"]).astype(MXU_DT))
    b3p = jnp.zeros((1, OUT_PAD), DT).at[:, :OUT_DIM].set(params["b3"])
    return {
        "wc": wc_exp,                              # (CHW, F) bf16
        "bc": params["bc"],                        # (1, F)   f32
        "w1l": w1[:CNN_FDIM, :].astype(MXU_DT),    # (F, h1)  bf16
        "w1g": w1[CNN_FDIM:, :].astype(MXU_DT),    # (F, h1)  bf16
        "b1": params["b1"],                        # (1, h1)  f32
        "w2": params["w2"].astype(MXU_DT),         # (h1, h2) bf16
        "b2": params["b2"],                        # (1, h2)  f32
        "w3": w3p,                                 # (h2, 128) bf16
        "b3": b3p,                                 # (1, 128)  f32
    }


# ------------------------------ wrapper --------------------------------
def baseline_spac_forward(inputs, prep):
    b_, cam_, fr_, c_, h_, w_ = inputs.shape
    assert (cam_, fr_, c_, h_, w_) == (CAM, FR, C, H, W)
    assert b_ % B_TILE == 0
    rows_per_b = cam_ * fr_
    chw = c_ * h_ * w_
    m = B_TILE * rows_per_b                    # rows per grid step (mult of 8)
    n_steps = b_ // B_TILE
    h1, h2 = MLP_DIMS

    # Frames stay f32 (reshape only); the bf16 cast happens inside the kernel.
    frames = inputs.reshape(b_ * rows_per_b, chw)

    def wspec(shape):
        return pl.BlockSpec(shape, lambda i: (0,) * len(shape))

    out = pl.pallas_call(
        _fused_kernel,
        out_shape=jax.ShapeDtypeStruct((b_ * rows_per_b, OUT_PAD), DT),
        grid=(n_steps,),
        in_specs=[pl.BlockSpec((m, chw), lambda i: (i, 0)),
                  wspec((chw, CNN_FDIM)), wspec((1, CNN_FDIM)),
                  wspec((CNN_FDIM, h1)), wspec((CNN_FDIM, h1)), wspec((1, h1)),
                  wspec((h1, h2)), wspec((1, h2)),
                  wspec((h2, OUT_PAD)), wspec((1, OUT_PAD))],
        out_specs=pl.BlockSpec((m, OUT_PAD), lambda i: (i, 0)),
        compiler_params=pltpu.CompilerParams(
            dimension_semantics=("parallel",)),   # v7x: 2 TCs split the steps
    )(frames, prep["wc"], prep["bc"], prep["w1l"], prep["w1g"], prep["b1"],
      prep["w2"], prep["b2"], prep["w3"], prep["b3"])

    return out[:, :OUT_DIM].reshape(b_, cam_, fr_, OUT_DIM)


# --------------------------- reference (plain JAX) ---------------------------
def reference(inputs, params):
    b_, cam_, fr_, c_, h_, w_ = inputs.shape
    hw = h_ * w_
    frames = inputs.reshape(b_ * cam_ * fr_, c_ * hw).astype(MXU_DT)
    wc_exp = (jnp.repeat(params["wc"], hw, axis=0) / hw).astype(MXU_DT)
    feats = jnp.dot(frames, wc_exp,
                    preferred_element_type=jnp.float32) + params["bc"]
    local = feats.reshape(b_, cam_, fr_, CNN_FDIM)
    glob = jnp.max(local, axis=1, keepdims=True)
    glob = jnp.broadcast_to(glob, local.shape)
    cat = (jnp.concatenate([local, glob], -1)
           .reshape(-1, 2 * CNN_FDIM).astype(MXU_DT))
    h = _leaky(jnp.dot(cat, params["w1"].astype(MXU_DT),
                       preferred_element_type=jnp.float32) + params["b1"])
    h = _leaky(jnp.dot(h.astype(MXU_DT), params["w2"].astype(MXU_DT),
                       preferred_element_type=jnp.float32) + params["b2"])
    logits = jnp.dot(h.astype(MXU_DT), params["w3"].astype(MXU_DT),
                     preferred_element_type=jnp.float32) + params["b3"]
    return logits.reshape(b_, cam_, fr_, OUT_DIM)


# ------------------------------ main --------------------------------
if __name__ == "__main__":
    key = jax.random.PRNGKey(0)
    keys = jax.random.split(key, 9)
    h1, h2 = MLP_DIMS

    inputs = jax.random.normal(keys[0], (B, CAM, FR, C, H, W), dtype=DT)

    params = {
        "wc": 0.2 * jax.random.normal(keys[1], (C, CNN_FDIM), dtype=DT),
        "bc": 0.1 * jax.random.normal(keys[2], (1, CNN_FDIM), dtype=DT),
        "w1": 0.1 * jax.random.normal(keys[3], (2 * CNN_FDIM, h1), dtype=DT),
        "b1": 0.05 * jax.random.normal(keys[4], (1, h1), dtype=DT),
        "w2": 0.1 * jax.random.normal(keys[5], (h1, h2), dtype=DT),
        "b2": 0.05 * jax.random.normal(keys[6], (1, h2), dtype=DT),
        "w3": 0.1 * jax.random.normal(keys[7], (h2, OUT_DIM), dtype=DT),
        "b3": jnp.zeros((1, OUT_DIM), dtype=DT),
    }

    prep = prepare_params(params, (C, H, W))          # one-time, off hot path
    logits = jax.block_until_ready(baseline_spac_forward(inputs, prep))
    ref = jax.block_until_ready(reference(inputs, params))

    assert logits.shape == (B, CAM, FR, OUT_DIM), logits.shape
    # bf16 matmul operands -> tolerance loosened vs. a pure-f32 comparison.
    np.testing.assert_allclose(np.asarray(logits), np.asarray(ref),
                               rtol=1e-2, atol=1e-2)
    print("KERNEL_OK")
</pallas_src>

<mosaic_0001>
module attributes {stable_mosaic.version = 11 : i64} {
  func.func @_fused_kernel(%arg0: i32, %arg1: memref<24x768xf32, #tpu.memory_space<vmem>>, %arg2: memref<768x128xbf16, #tpu.memory_space<vmem>>, %arg3: memref<1x128xf32, #tpu.memory_space<vmem>>, %arg4: memref<128x128xbf16, #tpu.memory_space<vmem>>, %arg5: memref<128x128xbf16, #tpu.memory_space<vmem>>, %arg6: memref<1x128xf32, #tpu.memory_space<vmem>>, %arg7: memref<128x64xbf16, #tpu.memory_space<vmem>>, %arg8: memref<1x64xf32, #tpu.memory_space<vmem>>, %arg9: memref<64x128xbf16, #tpu.memory_space<vmem>>, %arg10: memref<1x128xf32, #tpu.memory_space<vmem>>, %arg11: memref<24x128xf32, #tpu.memory_space<vmem>>) attributes {dimension_semantics = [#tpu.dimension_semantics<parallel>], iteration_bounds = array<i64: 2>, scalar_prefetch = 0 : i64, scratch_operands = 0 : i64, tpu.core_type = #tpu.core_type<tc>, window_params = [{transform_indices = @transform_0, window_bounds = array<i64: 24, 768>}, {pipeline_mode = #tpu.pipeline_mode<synchronous>, transform_indices = @transform_1, window_bounds = array<i64: 768, 128>}, {pipeline_mode = #tpu.pipeline_mode<synchronous>, transform_indices = @transform_2, window_bounds = array<i64: 1, 128>}, {pipeline_mode = #tpu.pipeline_mode<synchronous>, transform_indices = @transform_3, window_bounds = array<i64: 128, 128>}, {pipeline_mode = #tpu.pipeline_mode<synchronous>, transform_indices = @transform_4, window_bounds = array<i64: 128, 128>}, {pipeline_mode = #tpu.pipeline_mode<synchronous>, transform_indices = @transform_5, window_bounds = array<i64: 1, 128>}, {pipeline_mode = #tpu.pipeline_mode<synchronous>, transform_indices = @transform_6, window_bounds = array<i64: 128, 64>}, {pipeline_mode = #tpu.pipeline_mode<synchronous>, transform_indices = @transform_7, window_bounds = array<i64: 1, 64>}, {pipeline_mode = #tpu.pipeline_mode<synchronous>, transform_indices = @transform_8, window_bounds = array<i64: 64, 128>}, {pipeline_mode = #tpu.pipeline_mode<synchronous>, transform_indices = @transform_9, window_bounds = array<i64: 1, 128>}, {transform_indices = @transform_10, window_bounds = array<i64: 24, 128>}]} {
    %c0 = arith.constant 0 : index
    %c0_0 = arith.constant 0 : index
    %0 = vector.load %arg1[%c0, %c0_0] : memref<24x768xf32, #tpu.memory_space<vmem>>, vector<24x768xf32>
    %1 = arith.truncf %0 : vector<24x768xf32> to vector<24x768xbf16>
    %c0_1 = arith.constant 0 : index
    %c0_2 = arith.constant 0 : index
    %2 = vector.load %arg2[%c0_1, %c0_2] : memref<768x128xbf16, #tpu.memory_space<vmem>>, vector<768x128xbf16>
    %cst = arith.constant dense<0.000000e+00> : vector<24x128xf32>
    %3 = tpu.matmul %1, %2, %cst {dimension_numbers = #tpu.dot_dimension_numbers<[1], [0], [0], [1], [0, 0, 1, 1], [], []>} : vector<24x768xbf16>, vector<768x128xbf16>, vector<24x128xf32> -> vector<24x128xf32>
    %c0_3 = arith.constant 0 : index
    %c0_4 = arith.constant 0 : index
    %4 = vector.load %arg3[%c0_3, %c0_4] : memref<1x128xf32, #tpu.memory_space<vmem>>, vector<1x128xf32>
    %5 = vector.broadcast %4 : vector<1x128xf32> to vector<24x128xf32>
    %6 = arith.addf %3, %5 : vector<24x128xf32>
    %7 = arith.truncf %6 : vector<24x128xf32> to vector<24x128xbf16>
    %c0_5 = arith.constant 0 : index
    %c0_6 = arith.constant 0 : index
    %8 = vector.load %arg4[%c0_5, %c0_6] : memref<128x128xbf16, #tpu.memory_space<vmem>>, vector<128x128xbf16>
    %cst_7 = arith.constant dense<0.000000e+00> : vector<24x128xf32>
    %9 = tpu.matmul %7, %8, %cst_7 {dimension_numbers = #tpu.dot_dimension_numbers<[1], [0], [0], [1], [0, 0, 1, 1], [], []>} : vector<24x128xbf16>, vector<128x128xbf16>, vector<24x128xf32> -> vector<24x128xf32>
    %10 = vector.extract_strided_slice %6 {offsets = [0, 0], sizes = [8, 128], strides = [1, 1]} : vector<24x128xf32> to vector<8x128xf32>
    %11 = vector.extract_strided_slice %6 {offsets = [8, 0], sizes = [8, 128], strides = [1, 1]} : vector<24x128xf32> to vector<8x128xf32>
    %12 = arith.maximumf %10, %11 : vector<8x128xf32>
    %13 = vector.extract_strided_slice %6 {offsets = [16, 0], sizes = [8, 128], strides = [1, 1]} : vector<24x128xf32> to vector<8x128xf32>
    %14 = arith.maximumf %12, %13 : vector<8x128xf32>
    %15 = arith.truncf %14 : vector<8x128xf32> to vector<8x128xbf16>
    %c0_8 = arith.constant 0 : index
    %c0_9 = arith.constant 0 : index
    %16 = vector.load %arg5[%c0_8, %c0_9] : memref<128x128xbf16, #tpu.memory_space<vmem>>, vector<128x128xbf16>
    %cst_10 = arith.constant dense<0.000000e+00> : vector<8x128xf32>
    %17 = tpu.matmul %15, %16, %cst_10 {dimension_numbers = #tpu.dot_dimension_numbers<[1], [0], [0], [1], [0, 0, 1, 1], [], []>} : vector<8x128xbf16>, vector<128x128xbf16>, vector<8x128xf32> -> vector<8x128xf32>
    %18 = tpu.concatenate %17, %17, %17 in 0 : vector<8x128xf32>, vector<8x128xf32>, vector<8x128xf32> -> vector<24x128xf32>
    %19 = arith.addf %9, %18 : vector<24x128xf32>
    %c0_11 = arith.constant 0 : index
    %c0_12 = arith.constant 0 : index
    %20 = vector.load %arg6[%c0_11, %c0_12] : memref<1x128xf32, #tpu.memory_space<vmem>>, vector<1x128xf32>
    %21 = vector.broadcast %20 : vector<1x128xf32> to vector<24x128xf32>
    %22 = arith.addf %19, %21 : vector<24x128xf32>
    %cst_13 = arith.constant 0.000000e+00 : f32
    %23 = vector.broadcast %cst_13 : f32 to vector<24x128xf32>
    %24 = arith.cmpf ogt, %22, %23 : vector<24x128xf32>
    %cst_14 = arith.constant 0.00999999977 : f32
    %25 = vector.broadcast %cst_14 : f32 to vector<24x128xf32>
    %26 = arith.mulf %25, %22 : vector<24x128xf32>
    %27 = arith.select %24, %22, %26 : vector<24x128xi1>, vector<24x128xf32>
    %28 = arith.truncf %27 : vector<24x128xf32> to vector<24x128xbf16>
    %c0_15 = arith.constant 0 : index
    %c0_16 = arith.constant 0 : index
    %29 = vector.load %arg7[%c0_15, %c0_16] : memref<128x64xbf16, #tpu.memory_space<vmem>>, vector<128x64xbf16>
    %cst_17 = arith.constant dense<0.000000e+00> : vector<24x64xf32>
    %30 = tpu.matmul %28, %29, %cst_17 {dimension_numbers = #tpu.dot_dimension_numbers<[1], [0], [0], [1], [0, 0, 1, 1], [], []>} : vector<24x128xbf16>, vector<128x64xbf16>, vector<24x64xf32> -> vector<24x64xf32>
    %c0_18 = arith.constant 0 : index
    %c0_19 = arith.constant 0 : index
    %31 = vector.load %arg8[%c0_18, %c0_19] : memref<1x64xf32, #tpu.memory_space<vmem>>, vector<1x64xf32>
    %32 = vector.broadcast %31 : vector<1x64xf32> to vector<24x64xf32>
    %33 = arith.addf %30, %32 : vector<24x64xf32>
    %cst_20 = arith.constant 0.000000e+00 : f32
    %34 = vector.broadcast %cst_20 : f32 to vector<24x64xf32>
    %35 = arith.cmpf ogt, %33, %34 : vector<24x64xf32>
    %cst_21 = arith.constant 0.00999999977 : f32
    %36 = vector.broadcast %cst_21 : f32 to vector<24x64xf32>
    %37 = arith.mulf %36, %33 : vector<24x64xf32>
    %38 = arith.select %35, %33, %37 : vector<24x64xi1>, vector<24x64xf32>
    %39 = arith.truncf %38 : vector<24x64xf32> to vector<24x64xbf16>
    %c0_22 = arith.constant 0 : index
    %c0_23 = arith.constant 0 : index
    %40 = vector.load %arg9[%c0_22, %c0_23] : memref<64x128xbf16, #tpu.memory_space<vmem>>, vector<64x128xbf16>
    %cst_24 = arith.constant dense<0.000000e+00> : vector<24x128xf32>
    %41 = tpu.matmul %39, %40, %cst_24 {dimension_numbers = #tpu.dot_dimension_numbers<[1], [0], [0], [1], [0, 0, 1, 1], [], []>} : vector<24x64xbf16>, vector<64x128xbf16>, vector<24x128xf32> -> vector<24x128xf32>
    %c0_25 = arith.constant 0 : index
    %c0_26 = arith.constant 0 : index
    %42 = vector.load %arg10[%c0_25, %c0_26] : memref<1x128xf32, #tpu.memory_space<vmem>>, vector<1x128xf32>
    %43 = vector.broadcast %42 : vector<1x128xf32> to vector<24x128xf32>
    %44 = arith.addf %41, %43 : vector<24x128xf32>
    %c0_27 = arith.constant 0 : index
    %c0_28 = arith.constant 0 : index
    %45 = vector.load %arg11[%c0_27, %c0_28] : memref<24x128xf32, #tpu.memory_space<vmem>>, vector<24x128xf32>
    tpu.vector_store %arg11[%c0_27, %c0_28], %44 {strides = array<i32>} : memref<24x128xf32, #tpu.memory_space<vmem>>, vector<24x128xf32>,
    return
  }
  func.func @transform_0(%arg0: i32) -> (i32, i32) {
    %c0_i32 = arith.constant 0 : i32
    %c0_i32_0 = arith.constant 0 : i32
    return %arg0, %c0_i32 : i32, i32
  }
  func.func @transform_1(%arg0: i32) -> (i32, i32) {
    %c0_i32 = arith.constant 0 : i32
    %c0_i32_0 = arith.constant 0 : i32
    %c0_i32_1 = arith.constant 0 : i32
    return %c0_i32, %c0_i32_0 : i32, i32
  }
  func.func @transform_2(%arg0: i32) -> (i32, i32) {
    %c0_i32 = arith.constant 0 : i32
    %c0_i32_0 = arith.constant 0 : i32
    %c0_i32_1 = arith.constant 0 : i32
    return %c0_i32, %c0_i32_0 : i32, i32
  }
  func.func @transform_3(%arg0: i32) -> (i32, i32) {
    %c0_i32 = arith.constant 0 : i32
    %c0_i32_0 = arith.constant 0 : i32
    %c0_i32_1 = arith.constant 0 : i32
    return %c0_i32, %c0_i32_0 : i32, i32
  }
  func.func @transform_4(%arg0: i32) -> (i32, i32) {
    %c0_i32 = arith.constant 0 : i32
    %c0_i32_0 = arith.constant 0 : i32
    %c0_i32_1 = arith.constant 0 : i32
    return %c0_i32, %c0_i32_0 : i32, i32
  }
  func.func @transform_5(%arg0: i32) -> (i32, i32) {
    %c0_i32 = arith.constant 0 : i32
    %c0_i32_0 = arith.constant 0 : i32
    %c0_i32_1 = arith.constant 0 : i32
    return %c0_i32, %c0_i32_0 : i32, i32
  }
  func.func @transform_6(%arg0: i32) -> (i32, i32) {
    %c0_i32 = arith.constant 0 : i32
    %c0_i32_0 = arith.constant 0 : i32
    %c0_i32_1 = arith.constant 0 : i32
    return %c0_i32, %c0_i32_0 : i32, i32
  }
  func.func @transform_7(%arg0: i32) -> (i32, i32) {
    %c0_i32 = arith.constant 0 : i32
    %c0_i32_0 = arith.constant 0 : i32
    %c0_i32_1 = arith.constant 0 : i32
    return %c0_i32, %c0_i32_0 : i32, i32
  }
  func.func @transform_8(%arg0: i32) -> (i32, i32) {
    %c0_i32 = arith.constant 0 : i32
    %c0_i32_0 = arith.constant 0 : i32
    %c0_i32_1 = arith.constant 0 : i32
    return %c0_i32, %c0_i32_0 : i32, i32
  }
  func.func @transform_9(%arg0: i32) -> (i32, i32) {
    %c0_i32 = arith.constant 0 : i32
    %c0_i32_0 = arith.constant 0 : i32
    %c0_i32_1 = arith.constant 0 : i32
    return %c0_i32, %c0_i32_0 : i32, i32
  }
  func.func @transform_10(%arg0: i32) -> (i32, i32) {
    %c0_i32 = arith.constant 0 : i32
    %c0_i32_0 = arith.constant 0 : i32
    return %arg0, %c0_i32 : i32, i32
  }
}

</mosaic_0001>

<llo_original>
// kernel: tpu_custom_call.1
$region0: #{tpu_custom_call.1}
  #allocation0 [shape = 'u32[]', space=smem, size = 0x4, offset = 0x4, fixed_abs, tag = 'smem constant byte address 0x4 - core index']
  #allocation1 [shape = 'u32[72,128]{1,0:T(1,128)}', space=vmem, size = 0x9000, scoped, tag = 'internal scratch']
  %s0 = inlined_call_operand.hbm [shape: f32[48,768], index: 0, kind: input, shape index: {}]
  %s1 = inlined_call_operand.hbm [shape: bf16[768,128], index: 1, kind: input, shape index: {}]
  %s2 = inlined_call_operand.vmem [shape: f32[1,128], index: 2, kind: input, shape index: {}]
  %s3 = inlined_call_operand.vmem [shape: bf16[128,128], index: 3, kind: input, shape index: {}]
  %s4 = inlined_call_operand.hbm [shape: bf16[128,128], index: 4, kind: input, shape index: {}]
  %s5 = inlined_call_operand.vmem [shape: f32[1,128], index: 5, kind: input, shape index: {}]
  %s6 = inlined_call_operand.vmem [shape: bf16[128,64], index: 6, kind: input, shape index: {}]
  %s7 = inlined_call_operand.vmem [shape: f32[1,64], index: 7, kind: input, shape index: {}]
  %s8 = inlined_call_operand.vmem [shape: bf16[64,128], index: 8, kind: input, shape index: {}]
  %s9 = inlined_call_operand.vmem [shape: f32[1,128], index: 9, kind: input, shape index: {}]
  %s10 = inlined_call_operand.hbm [shape: f32[48,128], index: 10, kind: output, shape index: {}]
  %s11 = sld [smem:[#allocation0]]
  $region85: #{tpu_custom_call.1} parent=0
    _
  %s13 = ssub.s32 1, %s11
  %s14 = scalar_select 0, %s13, %s11
  $region1: #{tpu_custom_call.1} parent=0
    #allocation2 [shape = 'u8[147456]{0}', space=vmem, size = 0x24000, scoped, tag = 'input window, operand 0']
    #allocation3 [shape = 's32[2]{0}', space=sflag, size = 0x8, scoped, tag = 'scoped memory for tpu_custom_call.1']
    #allocation4 [shape = 's32[2]{0}', space=sflag, size = 0x8, scoped, tag = 'scoped memory for tpu_custom_call.1']
    #allocation5 [shape = 'u8[196608]{0}', space=vmem, size = 0x30000, scoped, tag = 'input window, operand 1, single buffered']
    #allocation6 [shape = 's32[1]{0}', space=sflag, size = 0x4, scoped, tag = 'scoped memory for tpu_custom_call.1']
    #allocation7 [shape = 'u8[32768]{0}', space=vmem, size = 0x8000, scoped, tag = 'input window, operand 4, single buffered']
    #allocation8 [shape = 'u8[24576]{0}', space=vmem, size = 0x6000, scoped, tag = 'output window, operand 0']
    %15 = vsyncpa [#allocation3], 0
    %s16 = scalar_lea.sflag [#allocation3], 1
    %17 = vsyncpa %s16, 0
    %18 = vsyncpa [#allocation6], 0
    %19 = vsyncpa [#allocation4], 0
    %s20 = scalar_lea.sflag [#allocation4], 1
    %21 = vsyncpa %s20, 0
    loop: start=0, step=1, limit=4
    $region2: #{tpu_custom_call.1} parent=1 // loop_pre_header
      _
    $region3: #{tpu_custom_call.1} parent=1 // loop_header
      %s23 = sphi 0, %s27
      %p24 = scmp.ge.s32.totalorder %s23, 4
      %s33 = sphi 0, %s35
      %s36 = sphi 0, %s33
      %s37 = sphi 0, %s36
      %s53 = sphi 0, %s37
      %s57 = sphi 0, %s57
      %s59 = sphi 0, %s57
      %s60 = sphi 0, %s59
      %s74 = sphi 0, %s60
      %s78 = sphi 0, %s78
      %s80 = sphi 0, %s78
      %s81 = sphi 0, %s80
      %s95 = sphi 0, %s81
      %s99 = sphi 0, %s99
      %s101 = sphi 0, %s99
      %s102 = sphi 0, %s101
      %s116 = sphi 0, %s102
      %s120 = sphi 0, %s120
      %s122 = sphi 0, %s120
      %s123 = sphi 0, %s122
      %s137 = sphi 0, %s123
      %s141 = sphi 0, %s141
      %s143 = sphi 0, %s141
      %s144 = sphi 0, %s143
      %s158 = sphi 0, %s144
      %s162 = sphi 0, %s162
      %s164 = sphi 0, %s162
      %s165 = sphi 0, %s164
      %s179 = sphi 0, %s165
      %s183 = sphi 0, %s183
      %s185 = sphi 0, %s183
      %s186 = sphi 0, %s185
      %s200 = sphi 0, %s186
      %s204 = sphi 0, %s204
      %s206 = sphi 0, %s204
      %s207 = sphi 0, %s206
      %s221 = sphi 0, %s207
      %s225 = sphi 0, %s225
      %s227 = sphi 0, %s225
      %s228 = sphi 0, %s227
      %s242 = sphi 0, %s228
      %s248 = sphi 0, %s250
      %s251 = sphi 0, %s248
      %s252 = sphi 0, %s251
      %s268 = sphi 0, %s252
    $region4: #{tpu_custom_call.1} parent=1 // loop_header_branch
      %26 = sbr.rel (%p24) target = $region8
    $region5: #{tpu_custom_call.1} parent=1 // loop_body
      %s28 = ssub.s32 %s23, 1
      %s29 = ssub.s32 %s23, 2
      %s30 = sadd.s32 %s23, 1
      %s31 = ssub.s32 %s23, %s30
      %p32 = scmp.eq.s32.totalorder %s31, 0
      %s34 = sadd.s32 %s33, 1
      %s35 = scalar_select %p32, %s33, %s34
      %p38 = pneg %p32
      %p39 = scmp.eq.s32.totalorder %s23, 1
      %p40 = por %p38, %p39
      %p41 = scmp.ne.s32.totalorder %s33, %s36
      %p42 = scmp.eq.s32.totalorder %s23, 0
      %p43 = por %p41, %p42
      %p44 = scmp.ne.s32.totalorder %s33, %s36
      %p45 = scmp.eq.s32.totalorder %s28, 1
      %p46 = por %p44, %p45
      %p47 = scmp.ne.s32.totalorder %s36, %s37
      %p48 = scmp.eq.s32.totalorder %s28, 0
      %p49 = por %p47, %p48
      %p50 = scmp.ne.s32.totalorder %s36, %s37
      %p51 = scmp.eq.s32.totalorder %s29, 1
      %p52 = por %p50, %p51
      %p54 = scmp.ne.s32.totalorder %s37, %s53
      %p55 = scmp.eq.s32.totalorder %s29, 0
      %p56 = por %p54, %p55
      %s58 = sadd.s32 %s57, 1
      %p61 = scmp.eq.s32.totalorder %s23, 1
      %p62 = scmp.ne.s32.totalorder %s57, %s59
      %p63 = scmp.eq.s32.totalorder %s23, 0
      %p64 = por %p62, %p63
      %p65 = scmp.ne.s32.totalorder %s57, %s59
      %p66 = scmp.eq.s32.totalorder %s28, 1
      %p67 = por %p65, %p66
      %p68 = scmp.ne.s32.totalorder %s59, %s60
      %p69 = scmp.eq.s32.totalorder %s28, 0
      %p70 = por %p68, %p69
      %p71 = scmp.ne.s32.totalorder %s59, %s60
      %p72 = scmp.eq.s32.totalorder %s29, 1
      %p73 = por %p71, %p72
      %p75 = scmp.ne.s32.totalorder %s60, %s74
      %p76 = scmp.eq.s32.totalorder %s29, 0
      %p77 = por %p75, %p76
      %s79 = sadd.s32 %s78, 1
      %p82 = scmp.eq.s32.totalorder %s23, 1
      %p83 = scmp.ne.s32.totalorder %s78, %s80
      %p84 = scmp.eq.s32.totalorder %s23, 0
      %p85 = por %p83, %p84
      %p86 = scmp.ne.s32.totalorder %s78, %s80
      %p87 = scmp.eq.s32.totalorder %s28, 1
      %p88 = por %p86, %p87
      %p89 = scmp.ne.s32.totalorder %s80, %s81
      %p90 = scmp.eq.s32.totalorder %s28, 0
      %p91 = por %p89, %p90
      %p92 = scmp.ne.s32.totalorder %s80, %s81
      %p93 = scmp.eq.s32.totalorder %s29, 1
      %p94 = por %p92, %p93
      %p96 = scmp.ne.s32.totalorder %s81, %s95
      %p97 = scmp.eq.s32.totalorder %s29, 0
      %p98 = por %p96, %p97
      %s100 = sadd.s32 %s99, 1
      %p103 = scmp.eq.s32.totalorder %s23, 1
      %p104 = scmp.ne.s32.totalorder %s99, %s101
      %p105 = scmp.eq.s32.totalorder %s23, 0
      %p106 = por %p104, %p105
      %p107 = scmp.ne.s32.totalorder %s99, %s101
      %p108 = scmp.eq.s32.totalorder %s28, 1
      %p109 = por %p107, %p108
      %p110 = scmp.ne.s32.totalorder %s101, %s102
      %p111 = scmp.eq.s32.totalorder %s28, 0
      %p112 = por %p110, %p111
      %p113 = scmp.ne.s32.totalorder %s101, %s102
      %p114 = scmp.eq.s32.totalorder %s29, 1
      %p115 = por %p113, %p114
      %p117 = scmp.ne.s32.totalorder %s102, %s116
      %p118 = scmp.eq.s32.totalorder %s29, 0
      %p119 = por %p117, %p118
      %s121 = sadd.s32 %s120, 1
      %p124 = scmp.eq.s32.totalorder %s23, 1
      %p125 = scmp.ne.s32.totalorder %s120, %s122
      %p126 = scmp.eq.s32.totalorder %s23, 0
      %p127 = por %p125, %p126
      %p128 = scmp.ne.s32.totalorder %s120, %s122
      %p129 = scmp.eq.s32.totalorder %s28, 1
      %p130 = por %p128, %p129
      %p131 = scmp.ne.s32.totalorder %s122, %s123
      %p132 = scmp.eq.s32.totalorder %s28, 0
      %p133 = por %p131, %p132
      %p134 = scmp.ne.s32.totalorder %s122, %s123
      %p135 = scmp.eq.s32.totalorder %s29, 1
      %p136 = por %p134, %p135
      %p138 = scmp.ne.s32.totalorder %s123, %s137
      %p139 = scmp.eq.s32.totalorder %s29, 0
      %p140 = por %p138, %p139
      %s142 = sadd.s32 %s141, 1
      %p145 = scmp.eq.s32.totalorder %s23, 1
      %p146 = scmp.ne.s32.totalorder %s141, %s143
      %p147 = scmp.eq.s32.totalorder %s23, 0
      %p148 = por %p146, %p147
      %p149 = scmp.ne.s32.totalorder %s141, %s143
      %p150 = scmp.eq.s32.totalorder %s28, 1
      %p151 = por %p149, %p150
      %p152 = scmp.ne.s32.totalorder %s143, %s144
      %p153 = scmp.eq.s32.totalorder %s28, 0
      %p154 = por %p152, %p153
      %p155 = scmp.ne.s32.totalorder %s143, %s144
      %p156 = scmp.eq.s32.totalorder %s29, 1
      %p157 = por %p155, %p156
      %p159 = scmp.ne.s32.totalorder %s144, %s158
      %p160 = scmp.eq.s32.totalorder %s29, 0
      %p161 = por %p159, %p160
      %s163 = sadd.s32 %s162, 1
      %p166 = scmp.eq.s32.totalorder %s23, 1
      %p167 = scmp.ne.s32.totalorder %s162, %s164
      %p168 = scmp.eq.s32.totalorder %s23, 0
      %p169 = por %p167, %p168
      %p170 = scmp.ne.s32.totalorder %s162, %s164
      %p171 = scmp.eq.s32.totalorder %s28, 1
      %p172 = por %p170, %p171
      %p173 = scmp.ne.s32.totalorder %s164, %s165
      %p174 = scmp.eq.s32.totalorder %s28, 0
      %p175 = por %p173, %p174
      %p176 = scmp.ne.s32.totalorder %s164, %s165
      %p177 = scmp.eq.s32.totalorder %s29, 1
      %p178 = por %p176, %p177
      %p180 = scmp.ne.s32.totalorder %s165, %s179
      %p181 = scmp.eq.s32.totalorder %s29, 0
      %p182 = por %p180, %p181
      %s184 = sadd.s32 %s183, 1
      %p187 = scmp.eq.s32.totalorder %s23, 1
      %p188 = scmp.ne.s32.totalorder %s183, %s185
      %p189 = scmp.eq.s32.totalorder %s23, 0
      %p190 = por %p188, %p189
      %p191 = scmp.ne.s32.totalorder %s183, %s185
      %p192 = scmp.eq.s32.totalorder %s28, 1
      %p193 = por %p191, %p192
      %p194 = scmp.ne.s32.totalorder %s185, %s186
      %p195 = scmp.eq.s32.totalorder %s28, 0
      %p196 = por %p194, %p195
      %p197 = scmp.ne.s32.totalorder %s185, %s186
      %p198 = scmp.eq.s32.totalorder %s29, 1
      %p199 = por %p197, %p198
      %p201 = scmp.ne.s32.totalorder %s186, %s200
      %p202 = scmp.eq.s32.totalorder %s29, 0
      %p203 = por %p201, %p202
      %s205 = sadd.s32 %s204, 1
      %p208 = scmp.eq.s32.totalorder %s23, 1
      %p209 = scmp.ne.s32.totalorder %s204, %s206
      %p210 = scmp.eq.s32.totalorder %s23, 0
      %p211 = por %p209, %p210
      %p212 = scmp.ne.s32.totalorder %s204, %s206
      %p213 = scmp.eq.s32.totalorder %s28, 1
      %p214 = por %p212, %p213
      %p215 = scmp.ne.s32.totalorder %s206, %s207
      %p216 = scmp.eq.s32.totalorder %s28, 0
      %p217 = por %p215, %p216
      %p218 = scmp.ne.s32.totalorder %s206, %s207
      %p219 = scmp.eq.s32.totalorder %s29, 1
      %p220 = por %p218, %p219
      %p222 = scmp.ne.s32.totalorder %s207, %s221
      %p223 = scmp.eq.s32.totalorder %s29, 0
      %p224 = por %p222, %p223
      %s226 = sadd.s32 %s225, 1
      %p229 = scmp.eq.s32.totalorder %s23, 1
      %p230 = scmp.ne.s32.totalorder %s225, %s227
      %p231 = scmp.eq.s32.totalorder %s23, 0
      %p232 = por %p230, %p231
      %p233 = scmp.ne.s32.totalorder %s225, %s227
      %p234 = scmp.eq.s32.totalorder %s28, 1
      %p235 = por %p233, %p234
      %p236 = scmp.ne.s32.totalorder %s227, %s228
      %p237 = scmp.eq.s32.totalorder %s28, 0
      %p238 = por %p236, %p237
      %p239 = scmp.ne.s32.totalorder %s227, %s228
      %p240 = scmp.eq.s32.totalorder %s29, 1
      %p241 = por %p239, %p240
      %p243 = scmp.ne.s32.totalorder %s228, %s242
      %p244 = scmp.eq.s32.totalorder %s29, 0
      %p245 = por %p243, %p244
      %s246 = ssub.s32 %s23, %s30
      %p247 = scmp.eq.s32.totalorder %s246, 0
      %s249 = sadd.s32 %s248, 1
      %s250 = scalar_select %p247, %s248, %s249
      %p253 = pneg %p247
      %p254 = scmp.eq.s32.totalorder %s23, 1
      %p255 = por %p253, %p254
      %p256 = scmp.ne.s32.totalorder %s248, %s251
      %p257 = scmp.eq.s32.totalorder %s23, 0
      %p258 = por %p256, %p257
      %p259 = scmp.ne.s32.totalorder %s248, %s251
      %p260 = scmp.eq.s32.totalorder %s28, 1
      %p261 = por %p259, %p260
      %p262 = scmp.ne.s32.totalorder %s251, %s252
      %p263 = scmp.eq.s32.totalorder %s28, 0
      %p264 = por %p262, %p263
      %p265 = scmp.ne.s32.totalorder %s251, %s252
      %p266 = scmp.eq.s32.totalorder %s29, 1
      %p267 = por %p265, %p266
      %p269 = scmp.ne.s32.totalorder %s252, %s268
      %p270 = scmp.eq.s32.totalorder %s29, 0
      %p271 = por %p269, %p270
      %p272 = scmp.le.s32.totalorder 1, %s23
      %p273 = scmp.lt.s32.totalorder %s23, 3
      %p274 = pnand %p272, %p273
      %p275 = pneg %p274
      // Predicated region
      $region9: #{tpu_custom_call.1} parent=5 // pred_check
        _
      $region10: #{tpu_custom_call.1} parent=5 // pred_check_branch
        %277 = sbr.rel (%p274) target = $region12
      $region11: #{tpu_custom_call.1} parent=5 // pred_region
        %s278 = ssub.s32 %s23, 1
        // Predicated region
        $region13: #{tpu_custom_call.1} parent=11 // pred_check
          %p279 = pneg %p70
        $region14: #{tpu_custom_call.1} parent=11 // pred_check_branch
          %281 = sbr.rel (%p279) target = $region16
        $region15: #{tpu_custom_call.1} parent=11 // pred_region
          %283 = vsyncadd [#allocation6], 0
          %s284 = sshll.u32 %s1, 4
          %s285 = int_to_ptr.hbm [resolvable:$true] %s284
          %s286 = sshll.u32 [#allocation5], 4
          %s287 = int_to_ptr.vmem [resolvable:$true] %s286
          %292 = dma.hbm_to_vmem [thread:$0]  %s285, 6144, %s287, [#allocation6], 64, 64, 4
        $region16: #{tpu_custom_call.1} parent=11 // pred_fallthru
          _
        // Predicated region
        $region17: #{tpu_custom_call.1} parent=11 // pred_check
          %p293 = pneg %p91
        $region18: #{tpu_custom_call.1} parent=11 // pred_check_branch
          %295 = sbr.rel (%p293) target = $region20
        $region19: #{tpu_custom_call.1} parent=11 // pred_region
          _
        $region20: #{tpu_custom_call.1} parent=11 // pred_fallthru
          _
        // Predicated region
        $region21: #{tpu_custom_call.1} parent=11 // pred_check
          %p296 = pneg %p112
        $region22: #{tpu_custom_call.1} parent=11 // pred_check_branch
          %298 = sbr.rel (%p296) target = $region24
        $region23: #{tpu_custom_call.1} parent=11 // pred_region
          _
        $region24: #{tpu_custom_call.1} parent=11 // pred_fallthru
          _
        // Predicated region
        $region25: #{tpu_custom_call.1} parent=11 // pred_check
          %p299 = pneg %p133
        $region26: #{tpu_custom_call.1} parent=11 // pred_check_branch
          %301 = sbr.rel (%p299) target = $region28
        $region27: #{tpu_custom_call.1} parent=11 // pred_region
          %303 = vsyncadd [#allocation6], 0
          %s304 = sshll.u32 %s4, 4
          %s305 = int_to_ptr.hbm [resolvable:$true] %s304
          %s306 = sshll.u32 [#allocation7], 4
          %s307 = int_to_ptr.vmem [resolvable:$true] %s306
          %312 = dma.hbm_to_vmem [thread:$0]  %s305, 1024, %s307, [#allocation6], 64, 64, 4
        $region28: #{tpu_custom_call.1} parent=11 // pred_fallthru
          _
        // Predicated region
        $region29: #{tpu_custom_call.1} parent=11 // pred_check
          %p313 = pneg %p154
        $region30: #{tpu_custom_call.1} parent=11 // pred_check_branch
          %315 = sbr.rel (%p313) target = $region32
        $region31: #{tpu_custom_call.1} parent=11 // pred_region
          _
        $region32: #{tpu_custom_call.1} parent=11 // pred_fallthru
          _
        // Predicated region
        $region33: #{tpu_custom_call.1} parent=11 // pred_check
          %p316 = pneg %p175
        $region34: #{tpu_custom_call.1} parent=11 // pred_check_branch
          %318 = sbr.rel (%p316) target = $region36
        $region35: #{tpu_custom_call.1} parent=11 // pred_region
          _
        $region36: #{tpu_custom_call.1} parent=11 // pred_fallthru
          _
        // Predicated region
        $region37: #{tpu_custom_call.1} parent=11 // pred_check
          %p319 = pneg %p196
        $region38: #{tpu_custom_call.1} parent=11 // pred_check_branch
          %321 = sbr.rel (%p319) target = $region40
        $region39: #{tpu_custom_call.1} parent=11 // pred_region
          _
        $region40: #{tpu_custom_call.1} parent=11 // pred_fallthru
          _
        // Predicated region
        $region41: #{tpu_custom_call.1} parent=11 // pred_check
          %p322 = pneg %p217
        $region42: #{tpu_custom_call.1} parent=11 // pred_check_branch
          %324 = sbr.rel (%p322) target = $region44
        $region43: #{tpu_custom_call.1} parent=11 // pred_region
          _
        $region44: #{tpu_custom_call.1} parent=11 // pred_fallthru
          _
        // Predicated region
        $region45: #{tpu_custom_call.1} parent=11 // pred_check
          %p325 = pneg %p238
        $region46: #{tpu_custom_call.1} parent=11 // pred_check_branch
          %327 = sbr.rel (%p325) target = $region48
        $region47: #{tpu_custom_call.1} parent=11 // pred_region
          _
        $region48: #{tpu_custom_call.1} parent=11 // pred_fallthru
          _
      $region12: #{tpu_custom_call.1} parent=5 // pred_fallthru
        _
      %p328 = scmp.lt.s32.totalorder %s23, 2
      // Predicated region
      $region49: #{tpu_custom_call.1} parent=5 // pred_check
        %p329 = pneg %p328
      $region50: #{tpu_custom_call.1} parent=5 // pred_check_branch
        %331 = sbr.rel (%p329) target = $region52
      $region51: #{tpu_custom_call.1} parent=5 // pred_region
        // Predicated region
        $region53: #{tpu_custom_call.1} parent=51 // pred_check
          %p332 = pneg %p43
        $region54: #{tpu_custom_call.1} parent=51 // pred_check_branch
          %334 = sbr.rel (%p332) target = $region56
        $region55: #{tpu_custom_call.1} parent=51 // pred_region
          %s335 = sand.u32 %s33, 1
          %s336 = scalar_lea.sflag [#allocation3], %s335
          %s337 = sand.u32 %s33, 1
          %s338 = smul.addr %s337, 144
          %s339 = scalar_lea.vmem [#allocation2], %s338
          %s340 = smul.u32 3, %s23
          %342 = vsyncadd %s336, 0
          %s343 = smul.addr %s340, 6
          %s344 = smul.addr %s343, 8
          %s345 = scalar_lea.hbm %s0, %s344
          %s346 = sshll.u32 %s345, 4
          %s347 = int_to_ptr.hbm [resolvable:$true] %s346
          %s348 = sshll.u32 %s339, 4
          %s349 = int_to_ptr.vmem [resolvable:$true] %s348
          %354 = dma.hbm_to_vmem [thread:$0]  %s347, 2304, %s349, %s336, 768, 768, 48
        $region56: #{tpu_custom_call.1} parent=51 // pred_fallthru
          _
      $region52: #{tpu_custom_call.1} parent=5 // pred_fallthru
        _
      %p355 = scmp.le.s32.totalorder 1, %s23
      %p356 = scmp.lt.s32.totalorder %s23, 3
      %p357 = pnand %p355, %p356
      %p358 = pneg %p357
      // Predicated region
      $region57: #{tpu_custom_call.1} parent=5 // pred_check
        _
      $region58: #{tpu_custom_call.1} parent=5 // pred_check_branch
        %360 = sbr.rel (%p357) target = $region60
      $region59: #{tpu_custom_call.1} parent=5 // pred_region
        %s361 = ssub.s32 %s23, 1
        %s362 = sand.u32 %s36, 1
        %s363 = scalar_lea.sflag [#allocation3], %s362
        %s364 = sand.u32 %s36, 1
        %s365 = smul.addr %s364, 144
        %s366 = scalar_lea.vmem [#allocation2], %s365
        // Predicated region
        $region61: #{tpu_custom_call.1} parent=59 // pred_check
          %p367 = pneg %p49
        $region62: #{tpu_custom_call.1} parent=59 // pred_check_branch
          %369 = sbr.rel (%p367) target = $region64
        $region63: #{tpu_custom_call.1} parent=59 // pred_region
          %371 = dma.done %s363, 2304
        $region64: #{tpu_custom_call.1} parent=59 // pred_fallthru
          _
        // Predicated region
        $region65: #{tpu_custom_call.1} parent=59 // pred_check
          %p372 = pneg %p70
        $region66: #{tpu_custom_call.1} parent=59 // pred_check_branch
          %374 = sbr.rel (%p372) target = $region68
        $region67: #{tpu_custom_call.1} parent=59 // pred_region
          %376 = dma.done [#allocation6], 6144
        $region68: #{tpu_custom_call.1} parent=59 // pred_fallthru
          _
        // Predicated region
        $region69: #{tpu_custom_call.1} parent=59 // pred_check
          %p377 = pneg %p133
        $region70: #{tpu_custom_call.1} parent=59 // pred_check_branch
          %379 = sbr.rel (%p377) target = $region72
        $region71: #{tpu_custom_call.1} parent=59 // pred_region
          %381 = dma.done [#allocation6], 1024
        $region72: #{tpu_custom_call.1} parent=59 // pred_fallthru
          _
        %s382 = sand.u32 %s36, 1
        %s383 = scalar_lea.sflag [#allocation3], %s382
        %s384 = sand.u32 %s36, 1
        %s385 = smul.addr %s384, 144
        %s386 = scalar_lea.vmem [#allocation2], %s385
        %p387 = pneg %p49
        %p388 = pneg %p46
        %p389 = pneg %p70
        %p390 = pneg %p67
        %p391 = pneg %p91
        %p392 = pneg %p88
        %p393 = pneg %p112
        %p394 = pneg %p109
        %p395 = pneg %p133
        %p396 = pneg %p130
        %p397 = pneg %p154
        %p398 = pneg %p151
        %p399 = pneg %p175
        %p400 = pneg %p172
        %p401 = pneg %p196
        %p402 = pneg %p193
        %p403 = pneg %p217
        %p404 = pneg %p214
        %p405 = pneg %p238
        %p406 = pneg %p235
        %p407 = pneg %p264
        %p408 = pneg %p261
        %s409 = sand.u32 %s251, 1
        %s410 = scalar_lea.sflag [#allocation4], %s409
        %s411 = sand.u32 %s251, 1
        %s412 = smul.addr %s411, 24
        %s413 = scalar_lea.vmem [#allocation8], %s412
        %s414 = smul.u32 3, %s28
        %s415 = smul.u32 3, %s28
        %v417 = vld [vmem:[%s366] sm:$0xff]
        %v418 = vld [vmem:[%s366 + $0x8] sm:$0xff]
        %v419 = vld [vmem:[%s366 + $0x10] sm:$0xff]
        %v420 = vld [vmem:[%s366 + $0x18] sm:$0xff]
        %v421 = vld [vmem:[%s366 + $0x20] sm:$0xff]
        %v422 = vld [vmem:[%s366 + $0x28] sm:$0xff]
        %v423 = vld [vmem:[%s366 + $0x30] sm:$0xff]
        %v424 = vld [vmem:[%s366 + $0x38] sm:$0xff]
        %v425 = vld [vmem:[%s366 + $0x40] sm:$0xff]
        %v426 = vld [vmem:[%s366 + $0x48] sm:$0xff]
        %v427 = vld [vmem:[%s366 + $0x50] sm:$0xff]
        %v428 = vld [vmem:[%s366 + $0x58] sm:$0xff]
        %v429 = vld [vmem:[%s366 + $0x60] sm:$0xff]
        %v430 = vld [vmem:[%s366 + $0x68] sm:$0xff]
        %v431 = vld [vmem:[%s366 + $0x70] sm:$0xff]
        %v432 = vld [vmem:[%s366 + $0x78] sm:$0xff]
        %v433 = vld [vmem:[%s366 + $0x80] sm:$0xff]
        %v434 = vld [vmem:[%s366 + $0x88] sm:$0xff]
        %v435 = vpack.c.bf16 %v423, %v417
        %v436 = vpack.c.bf16 %v424, %v418
        %v437 = vpack.c.bf16 %v425, %v419
        %v438 = vpack.c.bf16 %v426, %v420
        %v439 = vpack.c.bf16 %v427, %v421
        %v440 = vpack.c.bf16 %v428, %v422
        %v441 = vpack.c.bf16 %v429, %v429
        %v442 = vpack.c.bf16 %v430, %v430
        %v443 = vpack.c.bf16 %v431, %v431
        %v444 = vpack.c.bf16 %v432, %v432
        %v445 = vpack.c.bf16 %v433, %v433
        %v446 = vpack.c.bf16 %v434, %v434
        %v447 = vld [vmem:[#allocation5] sm:$0xf]
        %v448 = vld [vmem:[#allocation5 + $0x4] sm:$0xf]
        %v449 = vld [vmem:[#allocation5 + $0x8] sm:$0xf]
        %v450 = vld [vmem:[#allocation5 + $0xc] sm:$0xf]
        %v451 = vld [vmem:[#allocation5 + $0x10] sm:$0xf]
        %v452 = vld [vmem:[#allocation5 + $0x14] sm:$0xf]
        %v453 = vld [vmem:[#allocation5 + $0x18] sm:$0xf]
        %v454 = vld [vmem:[#allocation5 + $0x1c] sm:$0xf]
        %v455 = vld [vmem:[#allocation5 + $0x20] sm:$0xf]
        %v456 = vld [vmem:[#allocation5 + $0x24] sm:$0xf]
        %v457 = vld [vmem:[#allocation5 + $0x28] sm:$0xf]
        %v458 = vld [vmem:[#allocation5 + $0x2c] sm:$0xf]
        %v459 = vld [vmem:[#allocation5 + $0x30] sm:$0xf]
        %v460 = vld [vmem:[#allocation5 + $0x34] sm:$0xf]
        %v461 = vld [vmem:[#allocation5 + $0x38] sm:$0xf]
        %v462 = vld [vmem:[#allocation5 + $0x3c] sm:$0xf]
        %v463 = vld [vmem:[#allocation5 + $0x40] sm:$0xf]
        %v464 = vld [vmem:[#allocation5 + $0x44] sm:$0xf]
        %v465 = vld [vmem:[#allocation5 + $0x48] sm:$0xf]
        %v466 = vld [vmem:[#allocation5 + $0x4c] sm:$0xf]
        %v467 = vld [vmem:[#allocation5 + $0x50] sm:$0xf]
        %v468 = vld [vmem:[#allocation5 + $0x54] sm:$0xf]
        %v469 = vld [vmem:[#allocation5 + $0x58] sm:$0xf]
        %v470 = vld [vmem:[#allocation5 + $0x5c] sm:$0xf]
        %v471 = vld [vmem:[#allocation5 + $0x60] sm:$0xf]
        %v472 = vld [vmem:[#allocation5 + $0x64] sm:$0xf]
        %v473 = vld [vmem:[#allocation5 + $0x68] sm:$0xf]
        %v474 = vld [vmem:[#allocation5 + $0x6c] sm:$0xf]
        %v475 = vld [vmem:[#allocation5 + $0x70] sm:$0xf]
        %v476 = vld [vmem:[#allocation5 + $0x74] sm:$0xf]
        %v477 = vld [vmem:[#allocation5 + $0x78] sm:$0xf]
        %v478 = vld [vmem:[#allocation5 + $0x7c] sm:$0xf]
        %v479 = vld [vmem:[#allocation5 + $0x80] sm:$0xf]
        %v480 = vld [vmem:[#allocation5 + $0x84] sm:$0xf]
        %v481 = vld [vmem:[#allocation5 + $0x88] sm:$0xf]
        %v482 = vld [vmem:[#allocation5 + $0x8c] sm:$0xf]
        %v483 = vld [vmem:[#allocation5 + $0x90] sm:$0xf]
        %v484 = vld [vmem:[#allocation5 + $0x94] sm:$0xf]
        %v485 = vld [vmem:[#allocation5 + $0x98] sm:$0xf]
        %v486 = vld [vmem:[#allocation5 + $0x9c] sm:$0xf]
        %v487 = vld [vmem:[#allocation5 + $0xa0] sm:$0xf]
        %v488 = vld [vmem:[#allocation5 + $0xa4] sm:$0xf]
        %v489 = vld [vmem:[#allocation5 + $0xa8] sm:$0xf]
        %v490 = vld [vmem:[#allocation5 + $0xac] sm:$0xf]
        %v491 = vld [vmem:[#allocation5 + $0xb0] sm:$0xf]
        %v492 = vld [vmem:[#allocation5 + $0xb4] sm:$0xf]
        %v493 = vld [vmem:[#allocation5 + $0xb8] sm:$0xf]
        %v494 = vld [vmem:[#allocation5 + $0xbc] sm:$0xf]
        %v495 = vld [vmem:[#allocation5 + $0xc0] sm:$0xf]
        %v496 = vld [vmem:[#allocation5 + $0xc4] sm:$0xf]
        %v497 = vld [vmem:[#allocation5 + $0xc8] sm:$0xf]
        %v498 = vld [vmem:[#allocation5 + $0xcc] sm:$0xf]
        %v499 = vld [vmem:[#allocation5 + $0xd0] sm:$0xf]
        %v500 = vld [vmem:[#allocation5 + $0xd4] sm:$0xf]
        %v501 = vld [vmem:[#allocation5 + $0xd8] sm:$0xf]
        %v502 = vld [vmem:[#allocation5 + $0xdc] sm:$0xf]
        %v503 = vld [vmem:[#allocation5 + $0xe0] sm:$0xf]
        %v504 = vld [vmem:[#allocation5 + $0xe4] sm:$0xf]
        %v505 = vld [vmem:[#allocation5 + $0xe8] sm:$0xf]
        %v506 = vld [vmem:[#allocation5 + $0xec] sm:$0xf]
        %v507 = vld [vmem:[#allocation5 + $0xf0] sm:$0xf]
        %v508 = vld [vmem:[#allocation5 + $0xf4] sm:$0xf]
        %v509 = vld [vmem:[#allocation5 + $0xf8] sm:$0xf]
        %v510 = vld [vmem:[#allocation5 + $0xfc] sm:$0xf]
        %v511 = vld [vmem:[#allocation5 + $0x100] sm:$0xf]
        %v512 = vld [vmem:[#allocation5 + $0x104] sm:$0xf]
        %v513 = vld [vmem:[#allocation5 + $0x108] sm:$0xf]
        %v514 = vld [vmem:[#allocation5 + $0x10c] sm:$0xf]
        %v515 = vld [vmem:[#allocation5 + $0x110] sm:$0xf]
        %v516 = vld [vmem:[#allocation5 + $0x114] sm:$0xf]
        %v517 = vld [vmem:[#allocation5 + $0x118] sm:$0xf]
        %v518 = vld [vmem:[#allocation5 + $0x11c] sm:$0xf]
        %v519 = vld [vmem:[#allocation5 + $0x120] sm:$0xf]
        %v520 = vld [vmem:[#allocation5 + $0x124] sm:$0xf]
        %v521 = vld [vmem:[#allocation5 + $0x128] sm:$0xf]
        %v522 = vld [vmem:[#allocation5 + $0x12c] sm:$0xf]
        %v523 = vld [vmem:[#allocation5 + $0x130] sm:$0xf]
        %v524 = vld [vmem:[#allocation5 + $0x134] sm:$0xf]
        %v525 = vld [vmem:[#allocation5 + $0x138] sm:$0xf]
        %v526 = vld [vmem:[#allocation5 + $0x13c] sm:$0xf]
        %v527 = vld [vmem:[#allocation5 + $0x140] sm:$0xf]
        %v528 = vld [vmem:[#allocation5 + $0x144] sm:$0xf]
        %v529 = vld [vmem:[#allocation5 + $0x148] sm:$0xf]
        %v530 = vld [vmem:[#allocation5 + $0x14c] sm:$0xf]
        %v531 = vld [vmem:[#allocation5 + $0x150] sm:$0xf]
        %v532 = vld [vmem:[#allocation5 + $0x154] sm:$0xf]
        %v533 = vld [vmem:[#allocation5 + $0x158] sm:$0xf]
        %v534 = vld [vmem:[#allocation5 + $0x15c] sm:$0xf]
        %v535 = vld [vmem:[#allocation5 + $0x160] sm:$0xf]
        %v536 = vld [vmem:[#allocation5 + $0x164] sm:$0xf]
        %v537 = vld [vmem:[#allocation5 + $0x168] sm:$0xf]
        %v538 = vld [vmem:[#allocation5 + $0x16c] sm:$0xf]
        %v539 = vld [vmem:[#allocation5 + $0x170] sm:$0xf]
        %v540 = vld [vmem:[#allocation5 + $0x174] sm:$0xf]
        %v541 = vld [vmem:[#allocation5 + $0x178] sm:$0xf]
        %v542 = vld [vmem:[#allocation5 + $0x17c] sm:$0xf]
        %v543 = vld [vmem:[%s2] sm:$0x1]
        %v545 = vperm.slane %v543, 0
        %v643 = vunpack.c.l.b16 %v447
        %v644 = vunpack.c.l.b16 %v448
        %v645 = vunpack.c.l.b16 %v449
        %v646 = vunpack.c.l.b16 %v450
        %v647 = vunpack.c.l.b16 %v451
        %v648 = vunpack.c.l.b16 %v452
        %v649 = vunpack.c.l.b16 %v453
        %v650 = vunpack.c.l.b16 %v454
        %v651 = vunpack.c.l.b16 %v455
        %v652 = vunpack.c.l.b16 %v456
        %v653 = vunpack.c.l.b16 %v457
        %v654 = vunpack.c.l.b16 %v458
        %v655 = vunpack.c.l.b16 %v459
        %v656 = vunpack.c.l.b16 %v460
        %v657 = vunpack.c.l.b16 %v461
        %v658 = vunpack.c.l.b16 %v462
        %v659 = vunpack.c.l.b16 %v463
        %v660 = vunpack.c.l.b16 %v464
        %v661 = vunpack.c.l.b16 %v465
        %v662 = vunpack.c.l.b16 %v466
        %v663 = vunpack.c.l.b16 %v467
        %v664 = vunpack.c.l.b16 %v468
        %v665 = vunpack.c.l.b16 %v469
        %v666 = vunpack.c.l.b16 %v470
        %v667 = vunpack.c.l.b16 %v471
        %v668 = vunpack.c.l.b16 %v472
        %v669 = vunpack.c.l.b16 %v473
        %v670 = vunpack.c.l.b16 %v474
        %v671 = vunpack.c.l.b16 %v475
        %v672 = vunpack.c.l.b16 %v476
        %v673 = vunpack.c.l.b16 %v477
        %v674 = vunpack.c.l.b16 %v478
        %v675 = vunpack.c.l.b16 %v479
        %v676 = vunpack.c.l.b16 %v480
        %v677 = vunpack.c.l.b16 %v481
        %v678 = vunpack.c.l.b16 %v482
        %v679 = vunpack.c.l.b16 %v483
        %v680 = vunpack.c.l.b16 %v484
        %v681 = vunpack.c.l.b16 %v485
        %v682 = vunpack.c.l.b16 %v486
        %v683 = vunpack.c.l.b16 %v487
        %v684 = vunpack.c.l.b16 %v488
        %v685 = vunpack.c.l.b16 %v489
        %v686 = vunpack.c.l.b16 %v490
        %v687 = vunpack.c.l.b16 %v491
        %v688 = vunpack.c.l.b16 %v492
        %v689 = vunpack.c.l.b16 %v493
        %v690 = vunpack.c.l.b16 %v494
        %v691 = vunpack.c.l.b16 %v495
        %v692 = vunpack.c.l.b16 %v496
        %v693 = vunpack.c.l.b16 %v497
        %v694 = vunpack.c.l.b16 %v498
        %v695 = vunpack.c.l.b16 %v499
        %v696 = vunpack.c.l.b16 %v500
        %v697 = vunpack.c.l.b16 %v501
        %v698 = vunpack.c.l.b16 %v502
        %v699 = vunpack.c.l.b16 %v503
        %v700 = vunpack.c.l.b16 %v504
        %v701 = vunpack.c.l.b16 %v505
        %v702 = vunpack.c.l.b16 %v506
        %v703 = vunpack.c.l.b16 %v507
        %v704 = vunpack.c.l.b16 %v508
        %v705 = vunpack.c.l.b16 %v509
        %v706 = vunpack.c.l.b16 %v510
        %v707 = vunpack.c.l.b16 %v511
        %v708 = vunpack.c.l.b16 %v512
        %v709 = vunpack.c.l.b16 %v513
        %v710 = vunpack.c.l.b16 %v514
        %v711 = vunpack.c.l.b16 %v515
        %v712 = vunpack.c.l.b16 %v516
        %v713 = vunpack.c.l.b16 %v517
        %v714 = vunpack.c.l.b16 %v518
        %v715 = vunpack.c.l.b16 %v519
        %v716 = vunpack.c.l.b16 %v520
        %v717 = vunpack.c.l.b16 %v521
        %v718 = vunpack.c.l.b16 %v522
        %v719 = vunpack.c.l.b16 %v523
        %v720 = vunpack.c.l.b16 %v524
        %v721 = vunpack.c.l.b16 %v525
        %v722 = vunpack.c.l.b16 %v526
        %v723 = vunpack.c.l.b16 %v527
        %v724 = vunpack.c.l.b16 %v528
        %v725 = vunpack.c.l.b16 %v529
        %v726 = vunpack.c.l.b16 %v530
        %v727 = vunpack.c.l.b16 %v531
        %v728 = vunpack.c.l.b16 %v532
        %v729 = vunpack.c.l.b16 %v533
        %v730 = vunpack.c.l.b16 %v534
        %v731 = vunpack.c.l.b16 %v535
        %v732 = vunpack.c.l.b16 %v536
        %v733 = vunpack.c.l.b16 %v537
        %v734 = vunpack.c.l.b16 %v538
        %v735 = vunpack.c.l.b16 %v539
        %v736 = vunpack.c.l.b16 %v540
        %v737 = vunpack.c.l.b16 %v541
        %v738 = vunpack.c.l.b16 %v542
        %v739 = vpack.c.b16 %v644, %v643
        %v740 = vpack.c.b16 %v646, %v645
        %v741 = vpack.c.b16 %v648, %v647
        %v742 = vpack.c.b16 %v650, %v649
        %v743 = vpack.c.b16 %v652, %v651
        %v744 = vpack.c.b16 %v654, %v653
        %v745 = vpack.c.b16 %v656, %v655
        %v746 = vpack.c.b16 %v658, %v657
        %v747 = vpack.c.b16 %v660, %v659
        %v748 = vpack.c.b16 %v662, %v661
        %v749 = vpack.c.b16 %v664, %v663
        %v750 = vpack.c.b16 %v666, %v665
        %v751 = vpack.c.b16 %v668, %v667
        %v752 = vpack.c.b16 %v670, %v669
        %v753 = vpack.c.b16 %v672, %v671
        %v754 = vpack.c.b16 %v674, %v673
        %v755 = vpack.c.b16 %v676, %v675
        %v756 = vpack.c.b16 %v678, %v677
        %v757 = vpack.c.b16 %v680, %v679
        %v758 = vpack.c.b16 %v682, %v681
        %v759 = vpack.c.b16 %v684, %v683
        %v760 = vpack.c.b16 %v686, %v685
        %v761 = vpack.c.b16 %v688, %v687
        %v762 = vpack.c.b16 %v690, %v689
        %v763 = vpack.c.b16 %v692, %v691
        %v764 = vpack.c.b16 %v694, %v693
        %v765 = vpack.c.b16 %v696, %v695
        %v766 = vpack.c.b16 %v698, %v697
        %v767 = vpack.c.b16 %v700, %v699
        %v768 = vpack.c.b16 %v702, %v701
        %v769 = vpack.c.b16 %v704, %v703
        %v770 = vpack.c.b16 %v706, %v705
        %v771 = vpack.c.b16 %v708, %v707
        %v772 = vpack.c.b16 %v710, %v709
        %v773 = vpack.c.b16 %v712, %v711
        %v774 = vpack.c.b16 %v714, %v713
        %v775 = vpack.c.b16 %v716, %v715
        %v776 = vpack.c.b16 %v718, %v717
        %v777 = vpack.c.b16 %v720, %v719
        %v778 = vpack.c.b16 %v722, %v721
        %v779 = vpack.c.b16 %v724, %v723
        %v780 = vpack.c.b16 %v726, %v725
        %v781 = vpack.c.b16 %v728, %v727
        %v782 = vpack.c.b16 %v730, %v729
        %v783 = vpack.c.b16 %v732, %v731
        %v784 = vpack.c.b16 %v734, %v733
        %v785 = vpack.c.b16 %v736, %v735
        %v786 = vpack.c.b16 %v738, %v737
        %835 = vmatpush.bf16.msra.mxu0 %v746
        %836 = vmatpush.bf16.msra.mxu0 %v745
        %837 = vmatpush.bf16.msra.mxu0 %v744
        %838 = vmatpush.bf16.msra.mxu0 %v743
        %839 = vmatpush.bf16.msra.mxu0 %v742
        %840 = vmatpush.bf16.msra.mxu0 %v741
        %841 = vmatpush.bf16.msra.mxu0 %v740
        %842 = vmatpush.bf16.msra.mxu0 %v739
        %843 = vmatmul.bf16.gmra.mxu0 %v435
        %v844 = vpop.f32.mrf.mxu0
        %v845 = vadd.f32 %v545, %v844
        %v846 = vpop.f32.mrf.mxu0
        %v847 = vadd.f32 %v545, %v846
        %848 = vmatmul.bf16.gmra.mxu0 %v441
        %v849 = vpop.f32.mrf.mxu0
        %v850 = vadd.f32 %v545, %v849
        %v851 = vpop.f32.mrf.mxu0
        %852 = vdwg.mxu0
        %853 = vmatpush.bf16.msra.mxu0 %v754
        %854 = vmatpush.bf16.msra.mxu0 %v753
        %855 = vmatpush.bf16.msra.mxu0 %v752
        %856 = vmatpush.bf16.msra.mxu0 %v751
        %857 = vmatpush.bf16.msra.mxu0 %v750
        %858 = vmatpush.bf16.msra.mxu0 %v749
        %859 = vmatpush.bf16.msra.mxu0 %v748
        %860 = vmatpush.bf16.msra.mxu0 %v747
        %861 = vmatmul.bf16.gmra.mxu0 %v436
        %v862 = vpop.f32.mrf.mxu0
        %v863 = vadd.f32 %v845, %v862
        %v864 = vpop.f32.mrf.mxu0
        %v865 = vadd.f32 %v847, %v864
        %866 = vmatmul.bf16.gmra.mxu0 %v442
        %v867 = vpop.f32.mrf.mxu0
        %v868 = vadd.f32 %v850, %v867
        %v869 = vpop.f32.mrf.mxu0
        %870 = vdwg.mxu0
        %871 = vmatpush.bf16.msra.mxu0 %v762
        %872 = vmatpush.bf16.msra.mxu0 %v761
        %873 = vmatpush.bf16.msra.mxu0 %v760
        %874 = vmatpush.bf16.msra.mxu0 %v759
        %875 = vmatpush.bf16.msra.mxu0 %v758
        %876 = vmatpush.bf16.msra.mxu0 %v757
        %877 = vmatpush.bf16.msra.mxu0 %v756
        %878 = vmatpush.bf16.msra.mxu0 %v755
        %879 = vmatmul.bf16.gmra.mxu0 %v437
        %v880 = vpop.f32.mrf.mxu0
        %v881 = vadd.f32 %v863, %v880
        %v882 = vpop.f32.mrf.mxu0
        %v883 = vadd.f32 %v865, %v882
        %884 = vmatmul.bf16.gmra.mxu0 %v443
        %v885 = vpop.f32.mrf.mxu0
        %v886 = vadd.f32 %v868, %v885
        %v887 = vpop.f32.mrf.mxu0
        %888 = vdwg.mxu0
        %889 = vmatpush.bf16.msra.mxu0 %v770
        %890 = vmatpush.bf16.msra.mxu0 %v769
        %891 = vmatpush.bf16.msra.mxu0 %v768
        %892 = vmatpush.bf16.msra.mxu0 %v767
        %893 = vmatpush.bf16.msra.mxu0 %v766
        %894 = vmatpush.bf16.msra.mxu0 %v765
        %895 = vmatpush.bf16.msra.mxu0 %v764
        %896 = vmatpush.bf16.msra.mxu0 %v763
        %897 = vmatmul.bf16.gmra.mxu0 %v438
        %v898 = vpop.f32.mrf.mxu0
        %v899 = vadd.f32 %v881, %v898
        %v900 = vpop.f32.mrf.mxu0
        %v901 = vadd.f32 %v883, %v900
        %902 = vmatmul.bf16.gmra.mxu0 %v444
        %v903 = vpop.f32.mrf.mxu0
        %v904 = vadd.f32 %v886, %v903
        %v905 = vpop.f32.mrf.mxu0
        %906 = vdwg.mxu0
        %907 = vmatpush.bf16.msra.mxu0 %v778
        %908 = vmatpush.bf16.msra.mxu0 %v777
        %909 = vmatpush.bf16.msra.mxu0 %v776
        %910 = vmatpush.bf16.msra.mxu0 %v775
        %911 = vmatpush.bf16.msra.mxu0 %v774
        %912 = vmatpush.bf16.msra.mxu0 %v773
        %913 = vmatpush.bf16.msra.mxu0 %v772
        %914 = vmatpush.bf16.msra.mxu0 %v771
        %915 = vmatmul.bf16.gmra.mxu0 %v439
        %v916 = vpop.f32.mrf.mxu0
        %v917 = vadd.f32 %v899, %v916
        %v918 = vpop.f32.mrf.mxu0
        %v919 = vadd.f32 %v901, %v918
        %920 = vmatmul.bf16.gmra.mxu0 %v445
        %v921 = vpop.f32.mrf.mxu0
        %v922 = vadd.f32 %v904, %v921
        %v923 = vpop.f32.mrf.mxu0
        %924 = vdwg.mxu0
        %925 = vmatpush.bf16.msra.mxu0 %v786
        %926 = vmatpush.bf16.msra.mxu0 %v785
        %927 = vmatpush.bf16.msra.mxu0 %v784
        %928 = vmatpush.bf16.msra.mxu0 %v783
        %929 = vmatpush.bf16.msra.mxu0 %v782
        %930 = vmatpush.bf16.msra.mxu0 %v781
        %931 = vmatpush.bf16.msra.mxu0 %v780
        %932 = vmatpush.bf16.msra.mxu0 %v779
        %933 = vmatmul.bf16.gmra.mxu0 %v440
        %v934 = vpop.f32.mrf.mxu0
        %v935 = vadd.f32 %v917, %v934
        %v936 = vpop.f32.mrf.mxu0
        %v937 = vadd.f32 %v919, %v936
        %938 = vmatmul.bf16.gmra.mxu0 %v446
        %v939 = vpop.f32.mrf.mxu0
        %v940 = vadd.f32 %v922, %v939
        %v941 = vpop.f32.mrf.mxu0
        %942 = vdwg.mxu0
        %v943 = vpack.c.bf16 %v937, %v935
        %v944 = vpack.c.bf16 %v940, %v940
        %v945 = vld [vmem:[%s3] sm:$0xf]
        %v946 = vld [vmem:[%s3 + $0x4] sm:$0xf]
        %v947 = vld [vmem:[%s3 + $0x8] sm:$0xf]
        %v948 = vld [vmem:[%s3 + $0xc] sm:$0xf]
        %v949 = vld [vmem:[%s3 + $0x10] sm:$0xf]
        %v950 = vld [vmem:[%s3 + $0x14] sm:$0xf]
        %v951 = vld [vmem:[%s3 + $0x18] sm:$0xf]
        %v952 = vld [vmem:[%s3 + $0x1c] sm:$0xf]
        %v953 = vld [vmem:[%s3 + $0x20] sm:$0xf]
        %v954 = vld [vmem:[%s3 + $0x24] sm:$0xf]
        %v955 = vld [vmem:[%s3 + $0x28] sm:$0xf]
        %v956 = vld [vmem:[%s3 + $0x2c] sm:$0xf]
        %v957 = vld [vmem:[%s3 + $0x30] sm:$0xf]
        %v958 = vld [vmem:[%s3 + $0x34] sm:$0xf]
        %v959 = vld [vmem:[%s3 + $0x38] sm:$0xf]
        %v960 = vld [vmem:[%s3 + $0x3c] sm:$0xf]
        %v961 = vmax.f32 %v935, %v937
        %v962 = vmax.f32 %v961, %v940
        %v963 = vpack.c.bf16 %v962, %v962
        %v964 = vld [vmem:[#allocation7] sm:$0xf]
        %v965 = vld [vmem:[#allocation7 + $0x4] sm:$0xf]
        %v966 = vld [vmem:[#allocation7 + $0x8] sm:$0xf]
        %v967 = vld [vmem:[#allocation7 + $0xc] sm:$0xf]
        %v968 = vld [vmem:[#allocation7 + $0x10] sm:$0xf]
        %v969 = vld [vmem:[#allocation7 + $0x14] sm:$0xf]
        %v970 = vld [vmem:[#allocation7 + $0x18] sm:$0xf]
        %v971 = vld [vmem:[#allocation7 + $0x1c] sm:$0xf]
        %v972 = vld [vmem:[#allocation7 + $0x20] sm:$0xf]
        %v973 = vld [vmem:[#allocation7 + $0x24] sm:$0xf]
        %v974 = vld [vmem:[#allocation7 + $0x28] sm:$0xf]
        %v975 = vld [vmem:[#allocation7 + $0x2c] sm:$0xf]
        %v976 = vld [vmem:[#allocation7 + $0x30] sm:$0xf]
        %v977 = vld [vmem:[#allocation7 + $0x34] sm:$0xf]
        %v978 = vld [vmem:[#allocation7 + $0x38] sm:$0xf]
        %v979 = vld [vmem:[#allocation7 + $0x3c] sm:$0xf]
        %v996 = vunpack.c.l.b16 %v964
        %v997 = vunpack.c.l.b16 %v965
        %v998 = vunpack.c.l.b16 %v966
        %v999 = vunpack.c.l.b16 %v967
        %v1000 = vunpack.c.l.b16 %v968
        %v1001 = vunpack.c.l.b16 %v969
        %v1002 = vunpack.c.l.b16 %v970
        %v1003 = vunpack.c.l.b16 %v971
        %v1004 = vunpack.c.l.b16 %v972
        %v1005 = vunpack.c.l.b16 %v973
        %v1006 = vunpack.c.l.b16 %v974
        %v1007 = vunpack.c.l.b16 %v975
        %v1008 = vunpack.c.l.b16 %v976
        %v1009 = vunpack.c.l.b16 %v977
        %v1010 = vunpack.c.l.b16 %v978
        %v1011 = vunpack.c.l.b16 %v979
        %v1012 = vpack.c.b16 %v997, %v996
        %v1013 = vpack.c.b16 %v999, %v998
        %v1014 = vpack.c.b16 %v1001, %v1000
        %v1015 = vpack.c.b16 %v1003, %v1002
        %v1016 = vpack.c.b16 %v1005, %v1004
        %v1017 = vpack.c.b16 %v1007, %v1006
        %v1018 = vpack.c.b16 %v1009, %v1008
        %v1019 = vpack.c.b16 %v1011, %v1010
        %1028 = vmatpush.bf16.msra.mxu0 %v1019
        %1029 = vmatpush.bf16.msra.mxu0 %v1018
        %1030 = vmatpush.bf16.msra.mxu0 %v1017
        %1031 = vmatpush.bf16.msra.mxu0 %v1016
        %1032 = vmatpush.bf16.msra.mxu0 %v1015
        %1033 = vmatpush.bf16.msra.mxu0 %v1014
        %1034 = vmatpush.bf16.msra.mxu0 %v1013
        %1035 = vmatpush.bf16.msra.mxu0 %v1012
        %1036 = vmatmul.bf16.gmra.mxu0 %v963
        %v1037 = vpop.f32.mrf.mxu0
        %v1038 = vadd.f32 0.0, %v1037
        %v1039 = vpop.f32.mrf.mxu0
        %1040 = vdwg.mxu0
        %v1057 = vunpack.c.l.b16 %v945
        %v1058 = vunpack.c.l.b16 %v946
        %v1059 = vunpack.c.l.b16 %v947
        %v1060 = vunpack.c.l.b16 %v948
        %v1061 = vunpack.c.l.b16 %v949
        %v1062 = vunpack.c.l.b16 %v950
        %v1063 = vunpack.c.l.b16 %v951
        %v1064 = vunpack.c.l.b16 %v952
        %v1065 = vunpack.c.l.b16 %v953
        %v1066 = vunpack.c.l.b16 %v954
        %v1067 = vunpack.c.l.b16 %v955
        %v1068 = vunpack.c.l.b16 %v956
        %v1069 = vunpack.c.l.b16 %v957
        %v1070 = vunpack.c.l.b16 %v958
        %v1071 = vunpack.c.l.b16 %v959
        %v1072 = vunpack.c.l.b16 %v960
        %v1073 = vpack.c.b16 %v1058, %v1057
        %v1074 = vpack.c.b16 %v1060, %v1059
        %v1075 = vpack.c.b16 %v1062, %v1061
        %v1076 = vpack.c.b16 %v1064, %v1063
        %v1077 = vpack.c.b16 %v1066, %v1065
        %v1078 = vpack.c.b16 %v1068, %v1067
        %v1079 = vpack.c.b16 %v1070, %v1069
        %v1080 = vpack.c.b16 %v1072, %v1071
        %1089 = vmatpush.bf16.msra.mxu0 %v1080
        %1090 = vmatpush.bf16.msra.mxu0 %v1079
        %1091 = vmatpush.bf16.msra.mxu0 %v1078
        %1092 = vmatpush.bf16.msra.mxu0 %v1077
        %1093 = vmatpush.bf16.msra.mxu0 %v1076
        %1094 = vmatpush.bf16.msra.mxu0 %v1075
        %1095 = vmatpush.bf16.msra.mxu0 %v1074
        %1096 = vmatpush.bf16.msra.mxu0 %v1073
        %1097 = vmatmul.bf16.gmra.mxu0 %v943
        %v1098 = vpop.f32.mrf.mxu0
        %v1099 = vadd.f32 %v1038, %v1098
        %v1100 = vpop.f32.mrf.mxu0
        %v1101 = vadd.f32 %v1038, %v1100
        %1102 = vmatmul.bf16.gmra.mxu0 %v944
        %v1103 = vpop.f32.mrf.mxu0
        %v1104 = vadd.f32 %v1038, %v1103
        %v1105 = vpop.f32.mrf.mxu0
        %1106 = vdwg.mxu0
        %v1107 = vld [vmem:[%s5] sm:$0x1]
        %v1109 = vperm.slane %v1107, 0
        %v1111 = vadd.f32 %v1099, %v1109
        %v1112 = vadd.f32 %v1101, %v1109
        %v1113 = vadd.f32 %v1104, %v1109
        %vm1114 = vcmp.gt.f32.partialorder %v1111, 0.0
        %vm1115 = vcmp.gt.f32.partialorder %v1112, 0.0
        %vm1116 = vcmp.gt.f32.partialorder %v1113, 0.0
        %v1117 = vmul.f32 %v1111, 0.01
        %v1118 = vmul.f32 %v1112, 0.01
        %v1119 = vmul.f32 %v1113, 0.01
        %v1120 = vsel %vm1114, %v1111, %v1117
        %v1121 = vsel %vm1115, %v1112, %v1118
        %v1122 = vsel %vm1116, %v1113, %v1119
        %v1123 = vpack.c.bf16 %v1121, %v1120
        %v1124 = vpack.c.bf16 %v1122, %v1122
        %v1125 = vld [vmem:[%s6] sm:$0xf]
        %v1126 = vld [vmem:[%s6 + $0x4] sm:$0xf]
        %v1127 = vld [vmem:[%s6 + $0x8] sm:$0xf]
        %v1128 = vld [vmem:[%s6 + $0xc] sm:$0xf]
        %v1129 = vld [vmem:[%s6 + $0x10] sm:$0xf]
        %v1130 = vld [vmem:[%s6 + $0x14] sm:$0xf]
        %v1131 = vld [vmem:[%s6 + $0x18] sm:$0xf]
        %v1132 = vld [vmem:[%s6 + $0x1c] sm:$0xf]
        %v1133 = vld [vmem:[%s6 + $0x20] sm:$0xf]
        %v1134 = vld [vmem:[%s6 + $0x24] sm:$0xf]
        %v1135 = vld [vmem:[%s6 + $0x28] sm:$0xf]
        %v1136 = vld [vmem:[%s6 + $0x2c] sm:$0xf]
        %v1137 = vld [vmem:[%s6 + $0x30] sm:$0xf]
        %v1138 = vld [vmem:[%s6 + $0x34] sm:$0xf]
        %v1139 = vld [vmem:[%s6 + $0x38] sm:$0xf]
        %v1140 = vld [vmem:[%s6 + $0x3c] sm:$0xf]
        %v1141 = vld [vmem:[%s7] sm:$0x1]
        %v1143 = vperm.slane %v1141, 0
        %v1161 = vunpack.c.l.b16 %v1125
        %v1162 = vunpack.c.l.b16 %v1126
        %v1163 = vunpack.c.l.b16 %v1127
        %v1164 = vunpack.c.l.b16 %v1128
        %v1165 = vunpack.c.l.b16 %v1129
        %v1166 = vunpack.c.l.b16 %v1130
        %v1167 = vunpack.c.l.b16 %v1131
        %v1168 = vunpack.c.l.b16 %v1132
        %v1169 = vunpack.c.l.b16 %v1133
        %v1170 = vunpack.c.l.b16 %v1134
        %v1171 = vunpack.c.l.b16 %v1135
        %v1172 = vunpack.c.l.b16 %v1136
        %v1173 = vunpack.c.l.b16 %v1137
        %v1174 = vunpack.c.l.b16 %v1138
        %v1175 = vunpack.c.l.b16 %v1139
        %v1176 = vunpack.c.l.b16 %v1140
        %v1177 = vpack.c.b16 %v1162, %v1161
        %v1178 = vpack.c.b16 %v1164, %v1163
        %v1179 = vpack.c.b16 %v1166, %v1165
        %v1180 = vpack.c.b16 %v1168, %v1167
        %v1181 = vpack.c.b16 %v1170, %v1169
        %v1182 = vpack.c.b16 %v1172, %v1171
        %v1183 = vpack.c.b16 %v1174, %v1173
        %v1184 = vpack.c.b16 %v1176, %v1175
        %1193 = vmatpush.bf16.msra.mxu0 %v1184
        %1194 = vmatpush.bf16.msra.mxu0 %v1183
        %1195 = vmatpush.bf16.msra.mxu0 %v1182
        %1196 = vmatpush.bf16.msra.mxu0 %v1181
        %1197 = vmatpush.bf16.msra.mxu0 %v1180
        %1198 = vmatpush.bf16.msra.mxu0 %v1179
        %1199 = vmatpush.bf16.msra.mxu0 %v1178
        %1200 = vmatpush.bf16.msra.mxu0 %v1177
        %1201 = vmatmul.bf16.gmra.mxu0 %v1123
        %v1202 = vpop.f32.mrf.mxu0
        %v1203 = vadd.f32 %v1143, %v1202
        %v1204 = vpop.f32.mrf.mxu0
        %v1205 = vadd.f32 %v1143, %v1204
        %1206 = vmatmul.bf16.gmra.mxu0 %v1124
        %v1207 = vpop.f32.mrf.mxu0
        %v1208 = vadd.f32 %v1143, %v1207
        %v1209 = vpop.f32.mrf.mxu0
        %1210 = vdwg.mxu0
        %vm1211 = vcmp.gt.f32.partialorder %v1203, 0.0
        %vm1212 = vcmp.gt.f32.partialorder %v1205, 0.0
        %vm1213 = vcmp.gt.f32.partialorder %v1208, 0.0
        %v1214 = vmul.f32 %v1203, 0.01
        %v1215 = vmul.f32 %v1205, 0.01
        %v1216 = vmul.f32 %v1208, 0.01
        %v1217 = vsel %vm1211, %v1203, %v1214
        %v1218 = vsel %vm1212, %v1205, %v1215
        %v1219 = vsel %vm1213, %v1208, %v1216
        %v1220 = vpack.c.bf16 %v1218, %v1217
        %v1221 = vpack.c.bf16 %v1219, %v1219
        %v1222 = vld [vmem:[%s8] sm:$0xf]
        %v1223 = vld [vmem:[%s8 + $0x4] sm:$0xf]
        %v1224 = vld [vmem:[%s8 + $0x8] sm:$0xf]
        %v1225 = vld [vmem:[%s8 + $0xc] sm:$0xf]
        %v1226 = vld [vmem:[%s8 + $0x10] sm:$0xf]
        %v1227 = vld [vmem:[%s8 + $0x14] sm:$0xf]
        %v1228 = vld [vmem:[%s8 + $0x18] sm:$0xf]
        %v1229 = vld [vmem:[%s8 + $0x1c] sm:$0xf]
        %v1230 = vld [vmem:[%s9] sm:$0x1]
        %v1232 = vperm.slane %v1230, 0
        %v1242 = vunpack.c.l.b16 %v1222
        %v1243 = vunpack.c.l.b16 %v1223
        %v1244 = vunpack.c.l.b16 %v1224
        %v1245 = vunpack.c.l.b16 %v1225
        %v1246 = vunpack.c.l.b16 %v1226
        %v1247 = vunpack.c.l.b16 %v1227
        %v1248 = vunpack.c.l.b16 %v1228
        %v1249 = vunpack.c.l.b16 %v1229
        %v1250 = vpack.c.b16 %v1243, %v1242
        %v1251 = vpack.c.b16 %v1245, %v1244
        %v1252 = vpack.c.b16 %v1247, %v1246
        %v1253 = vpack.c.b16 %v1249, %v1248
        %vm1258 = vcmask 523264
        %v1260 = vsel %vm1258, %v1220, 0
        %v1263 = vsel %vm1258, %v1221, 0
        %1265 = vmatpush.bf16.msra.mxu0 0
        %1266 = vmatpush.bf16.msra.mxu0 0
        %1267 = vmatpush.bf16.msra.mxu0 0
        %1268 = vmatpush.bf16.msra.mxu0 0
        %1269 = vmatpush.bf16.msra.mxu0 %v1253
        %1270 = vmatpush.bf16.msra.mxu0 %v1252
        %1271 = vmatpush.bf16.msra.mxu0 %v1251
        %1272 = vmatpush.bf16.msra.mxu0 %v1250
        %1273 = vmatmul.bf16.gmra.mxu0 %v1260
        %v1274 = vpop.f32.mrf.mxu0
        %v1275 = vadd.f32 %v1232, %v1274
        %v1276 = vpop.f32.mrf.mxu0
        %v1277 = vadd.f32 %v1232, %v1276
        %1278 = vmatmul.bf16.gmra.mxu0 %v1263
        %v1279 = vpop.f32.mrf.mxu0
        %v1280 = vadd.f32 %v1232, %v1279
        %v1281 = vpop.f32.mrf.mxu0
        %1282 = vdwg.mxu0
        %1283 = vst [vmem:[%s413] sm:$0xff] %v1275
        %1284 = vst [vmem:[%s413 + $0x8] sm:$0xff] %v1277
        %1285 = vst [vmem:[%s413 + $0x10] sm:$0xff] %v1280
        %s1286 = sand.u32 %s251, 1
        %s1287 = scalar_lea.sflag [#allocation4], %s1286
        %s1288 = sand.u32 %s251, 1
        %s1289 = smul.addr %s1288, 24
        %s1290 = scalar_lea.vmem [#allocation8], %s1289
        // Predicated region
        $region73: #{tpu_custom_call.1} parent=59 // pred_check
          %p1291 = pneg %p261
        $region74: #{tpu_custom_call.1} parent=59 // pred_check_branch
          %1293 = sbr.rel (%p1291) target = $region76
        $region75: #{tpu_custom_call.1} parent=59 // pred_region
          %s1294 = smul.u32 3, %s28
          %1296 = vsyncadd %s1287, 0
          %s1297 = smul.addr %s1294, 8
          %s1298 = scalar_lea.hbm %s10, %s1297
          %s1299 = sshll.u32 %s1290, 4
          %s1300 = int_to_ptr.vmem [resolvable:$true] %s1299
          %s1301 = sshll.u32 %s1298, 4
          %s1302 = int_to_ptr.hbm [resolvable:$true] %s1301
          %1307 = dma.vmem_to_hbm [thread:$0]  %s1300, 384, %s1302, %s1287, 128, 128, 8
        $region76: #{tpu_custom_call.1} parent=59 // pred_fallthru
          _
      $region60: #{tpu_custom_call.1} parent=5 // pred_fallthru
        _
      %p1308 = scmp.le.s32.totalorder 2, %s23
      // Predicated region
      $region77: #{tpu_custom_call.1} parent=5 // pred_check
        %p1309 = pneg %p1308
      $region78: #{tpu_custom_call.1} parent=5 // pred_check_branch
        %1311 = sbr.rel (%p1309) target = $region80
      $region79: #{tpu_custom_call.1} parent=5 // pred_region
        %s1312 = ssub.s32 %s23, 2
        // Predicated region
        $region81: #{tpu_custom_call.1} parent=79 // pred_check
          %p1313 = pneg %p267
        $region82: #{tpu_custom_call.1} parent=79 // pred_check_branch
          %1315 = sbr.rel (%p1313) target = $region84
        $region83: #{tpu_custom_call.1} parent=79 // pred_region
          %s1316 = sand.u32 %s252, 1
          %s1317 = scalar_lea.sflag [#allocation4], %s1316
          %s1318 = sand.u32 %s252, 1
          %s1319 = smul.addr %s1318, 24
          %s1320 = scalar_lea.vmem [#allocation8], %s1319
          %1322 = dma.done %s1317, 384
        $region84: #{tpu_custom_call.1} parent=79 // pred_fallthru
          _
      $region80: #{tpu_custom_call.1} parent=5 // pred_fallthru
        _
    $region6: #{tpu_custom_call.1} parent=1 // loop_footer
      %s27 = sadd.s32 1, %s23
    $region7: #{tpu_custom_call.1} parent=1 // loop_footer_branch
      %22 = sbr.rel target = $region3
    $region8: #{tpu_custom_call.1} parent=1 // loop_exit
      _
    %1323 = vsyncpa [#allocation3], 1
    %s1324 = scalar_lea.sflag [#allocation3], 1
    %1325 = vsyncpa %s1324, 1
    %1326 = vsyncpa [#allocation6], 1
    %1327 = vsyncpa [#allocation4], 1
    %s1328 = scalar_lea.sflag [#allocation4], 1
    %1329 = vsyncpa %s1328, 1

</llo_original>
